<compile_context>
chip_gen: v7x
topology: tpu7x:2x2x1
jax: 0.10.0
libtpu: 0.0.40
codegen_flags: <defaults>
</compile_context>

<pallas_src>
import jax
import jax.numpy as jnp
from jax.experimental import pallas as pl
from jax.experimental.pallas import tpu as pltpu


def mlp_kernel(x_ref, w1_ref, w_ref, b_ref, o_ref):
    # Packed f32 bias slab: rows 0..2 = BN-folded biases of layers 1-3,
    # row 3 = output-layer bias broadcast across all 128 lanes.
    b1 = b_ref[0:1, :]
    b2 = b_ref[1:2, :]
    b3 = b_ref[2:3, :]
    b4 = b_ref[3:4, :]

    # layer1: Linear (BN folded) + ReLU        (Dropout = identity at inference)
    h = jnp.dot(x_ref[...], w1_ref[...], preferred_element_type=jnp.float32)
    h = jnp.maximum(h + b1, 0.0)

    # layer2 (out dim zero-padded to 128 lanes)
    h = jnp.dot(h.astype(jnp.bfloat16), w_ref[0], preferred_element_type=jnp.float32)
    h = jnp.maximum(h + b2, 0.0)

    # layer3 (in/out dims zero-padded to 128 lanes)
    h = jnp.dot(h.astype(jnp.bfloat16), w_ref[1], preferred_element_type=jnp.float32)
    h = jnp.maximum(h + b3, 0.0)

    # output layer: MXU matmul against a [H, 128] slab whose only non-zero column is the
    # real w4 -> lane-dense unmasked store; column 0 holds the result, wrapper slices it.
    o = jnp.dot(h.astype(jnp.bfloat16), w_ref[2], preferred_element_type=jnp.float32)
    o_ref[...] = o + b4


def _round_up(a, m):
    return ((a + m - 1) // m) * m


def create_nn_forward(x, prepared):
    """Fused forward pass. x: [B, input_size] float32. Returns [B, 1] float32."""
    B, F = x.shape
    H = prepared["w1"].shape[1]

    # Batch tile: big tiles for throughput, small (sublane-aligned) tile for tiny batches.
    if B >= 256:
        TM = 256
    elif B >= 128:
        TM = 128
    else:
        TM = max(16, _round_up(B, 16))
    Bp = _round_up(B, TM)

    xb = x.astype(jnp.bfloat16)
    if Bp != B:
        xb = jnp.pad(xb, ((0, Bp - B), (0, 0)))

    flops = 2 * Bp * (F * H + 3 * H * H)
    bytes_accessed = (Bp * F * 2                 # x (bf16)
                      + F * H * 2                # w1 (bf16)
                      + 3 * H * H * 2            # w2/w3/w4 stack (bf16)
                      + 8 * H * 4                # bias slab (f32)
                      + Bp * H * 4)              # output slab (f32)

    out = pl.pallas_call(
        mlp_kernel,
        out_shape=jax.ShapeDtypeStruct((Bp, H), jnp.float32),
        grid=(Bp // TM,),
        in_specs=[
            pl.BlockSpec((TM, F), lambda i: (i, 0)),       # x tile: moves with grid
            pl.BlockSpec((F, H), lambda i: (0, 0)),        # weights/bias: resident across steps
            pl.BlockSpec((3, H, H), lambda i: (0, 0, 0)),
            pl.BlockSpec((8, H), lambda i: (0, 0)),
        ],
        out_specs=pl.BlockSpec((TM, H), lambda i: (i, 0)),
        compiler_params=pltpu.CompilerParams(
            dimension_semantics=("parallel",)),
        cost_estimate=pl.CostEstimate(
            flops=flops, transcendentals=0, bytes_accessed=bytes_accessed),
    )(xb, prepared["w1"], prepared["w_stack"], prepared["bias_slab"])

    return out[:B, :1]


def make_raw_params(key, input_size, hidden_size=128):
    """Deterministic synthetic parameters matching CreateNN's shapes (eval mode)."""
    dims = [(input_size, hidden_size),
            (hidden_size, hidden_size // 2),
            (hidden_size // 2, hidden_size // 4),
            (hidden_size // 4, 1)]
    keys = jax.random.split(key, 20)
    p = {}
    ki = 0
    for li, (din, dout) in enumerate(dims, start=1):
        p[f"w{li}"] = jax.random.normal(keys[ki], (din, dout), jnp.float32) * 0.05; ki += 1
        p[f"b{li}"] = jax.random.normal(keys[ki], (1, dout), jnp.float32) * 0.01;   ki += 1
        if li < 4:  # BatchNorm1d running stats + affine
            p[f"gamma{li}"] = 1.0 + 0.1 * jax.random.normal(keys[ki], (1, dout), jnp.float32); ki += 1
            p[f"beta{li}"] = 0.1 * jax.random.normal(keys[ki], (1, dout), jnp.float32);        ki += 1
            p[f"mean{li}"] = 0.1 * jax.random.normal(keys[ki], (1, dout), jnp.float32);        ki += 1
            p[f"var{li}"] = jnp.abs(jax.random.normal(keys[ki], (1, dout), jnp.float32)) + 0.5; ki += 1
    return p


def prepare_params(raw, eps=1e-5):
    """Fold BN into the Linears, zero-pad to 128-lane tiles, pack weights/biases, cast to bf16."""
    F, h1 = raw["w1"].shape
    H = _round_up(h1, 128)

    def fold(li):
        s = raw[f"gamma{li}"] / jnp.sqrt(raw[f"var{li}"] + eps)
        t = raw[f"beta{li}"] - raw[f"mean{li}"] * s
        return raw[f"w{li}"] * s, raw[f"b{li}"] * s + t

    def pad2(a, rows, cols):
        return jnp.pad(a, ((0, rows - a.shape[0]), (0, cols - a.shape[1])))

    w1f, b1f = fold(1)
    w2f, b2f = fold(2)
    w3f, b3f = fold(3)
    w4pad = pad2(raw["w4"], H, H)          # [h3, 1] -> [H, H], real values only in column 0

    prepared = {
        "w1": pad2(w1f, F, H).astype(jnp.bfloat16),
        "w_stack": jnp.stack([pad2(w2f, H, H),
                              pad2(w3f, H, H),
                              w4pad]).astype(jnp.bfloat16),
    }

    bias_slab = jnp.zeros((8, H), jnp.float32)
    bias_slab = bias_slab.at[0, :].set(pad2(b1f, 1, H)[0])
    bias_slab = bias_slab.at[1, :].set(pad2(b2f, 1, H)[0])
    bias_slab = bias_slab.at[2, :].set(pad2(b3f, 1, H)[0])
    bias_slab = bias_slab.at[3, :].set(jnp.full((H,), raw["b4"][0, 0], jnp.float32))
    prepared["bias_slab"] = bias_slab
    return prepared


def reference_forward_raw(x, raw, eps=1e-5):
    """Pure-JAX f32 reference of the original eval-mode forward (Linear -> BN -> ReLU)x3 -> Linear."""
    h = x
    for li in range(1, 4):
        h = h @ raw[f"w{li}"] + raw[f"b{li}"]
        h = (h - raw[f"mean{li}"]) / jnp.sqrt(raw[f"var{li}"] + eps)
        h = h * raw[f"gamma{li}"] + raw[f"beta{li}"]
        h = jnp.maximum(h, 0.0)
    return h @ raw["w4"] + raw["b4"]


def reference_forward_prepared(x, p):
    """Pure-JAX replica of the exact kernel math (folded bf16 params, f32 accumulation)."""
    slab = p["bias_slab"]
    ws = p["w_stack"]
    h = jnp.dot(x.astype(jnp.bfloat16), p["w1"], preferred_element_type=jnp.float32)
    h = jnp.maximum(h + slab[0:1, :], 0.0)
    h = jnp.dot(h.astype(jnp.bfloat16), ws[0], preferred_element_type=jnp.float32)
    h = jnp.maximum(h + slab[1:2, :], 0.0)
    h = jnp.dot(h.astype(jnp.bfloat16), ws[1], preferred_element_type=jnp.float32)
    h = jnp.maximum(h + slab[2:3, :], 0.0)
    o = jnp.dot(h.astype(jnp.bfloat16), ws[2], preferred_element_type=jnp.float32)
    return (o + slab[3:4, :])[:, :1]


if __name__ == "__main__":
    key = jax.random.PRNGKey(0)
    B, input_size, hidden_size = 8, 32, 128

    kx, kp = jax.random.split(key)
    x = jax.random.normal(kx, (B, input_size), jnp.float32)
    raw = make_raw_params(kp, input_size, hidden_size)
    prepared = prepare_params(raw)

    out = jax.block_until_ready(create_nn_forward(x, prepared))
    assert out.shape == (B, 1)

    # Tight check: kernel vs pure-JAX replica of the same folded/bf16 math.
    ref_exact = reference_forward_prepared(x, prepared)
    assert jnp.allclose(out, ref_exact, atol=1e-3, rtol=1e-3), "mismatch vs folded reference"

    # Sanity check: kernel vs full-precision unfolded eval-mode module (bf16 quantization noise).
    ref_full = reference_forward_raw(x, raw)
    assert jnp.allclose(out, ref_full, atol=3e-2, rtol=5e-2), "mismatch vs f32 module reference"

    print("KERNEL_OK")
</pallas_src>

<mosaic_0001>
module attributes {stable_mosaic.version = 11 : i64} {
  func.func @mlp_kernel(%arg0: i32, %arg1: memref<16x32xbf16, #tpu.memory_space<vmem>>, %arg2: memref<32x128xbf16, #tpu.memory_space<vmem>>, %arg3: memref<3x128x128xbf16, #tpu.memory_space<vmem>>, %arg4: memref<8x128xf32, #tpu.memory_space<vmem>>, %arg5: memref<16x128xf32, #tpu.memory_space<vmem>>) attributes {dimension_semantics = [#tpu.dimension_semantics<parallel>], iteration_bounds = array<i64: 1>, scalar_prefetch = 0 : i64, scratch_operands = 0 : i64, tpu.core_type = #tpu.core_type<tc>, window_params = [{transform_indices = @transform_0, window_bounds = array<i64: 16, 32>}, {pipeline_mode = #tpu.pipeline_mode<synchronous>, transform_indices = @transform_1, window_bounds = array<i64: 32, 128>}, {pipeline_mode = #tpu.pipeline_mode<synchronous>, transform_indices = @transform_2, window_bounds = array<i64: 3, 128, 128>}, {pipeline_mode = #tpu.pipeline_mode<synchronous>, transform_indices = @transform_3, window_bounds = array<i64: 8, 128>}, {transform_indices = @transform_4, window_bounds = array<i64: 16, 128>}]} {
    %c0 = arith.constant 0 : index
    %c0_0 = arith.constant 0 : index
    %0 = vector.load %arg4[%c0, %c0_0] : memref<8x128xf32, #tpu.memory_space<vmem>>, vector<1x128xf32>
    %c1 = arith.constant 1 : index
    %c0_1 = arith.constant 0 : index
    %1 = vector.load %arg4[%c1, %c0_1] : memref<8x128xf32, #tpu.memory_space<vmem>>, vector<1x128xf32>
    %c2 = arith.constant 2 : index
    %c0_2 = arith.constant 0 : index
    %2 = vector.load %arg4[%c2, %c0_2] : memref<8x128xf32, #tpu.memory_space<vmem>>, vector<1x128xf32>
    %c3 = arith.constant 3 : index
    %c0_3 = arith.constant 0 : index
    %3 = vector.load %arg4[%c3, %c0_3] : memref<8x128xf32, #tpu.memory_space<vmem>>, vector<1x128xf32>
    %c0_4 = arith.constant 0 : index
    %c0_5 = arith.constant 0 : index
    %4 = vector.load %arg1[%c0_4, %c0_5] : memref<16x32xbf16, #tpu.memory_space<vmem>>, vector<16x32xbf16>
    %c0_6 = arith.constant 0 : index
    %c0_7 = arith.constant 0 : index
    %5 = vector.load %arg2[%c0_6, %c0_7] : memref<32x128xbf16, #tpu.memory_space<vmem>>, vector<32x128xbf16>
    %cst = arith.constant dense<0.000000e+00> : vector<16x128xf32>
    %6 = tpu.matmul %4, %5, %cst {dimension_numbers = #tpu.dot_dimension_numbers<[1], [0], [0], [1], [0, 0, 1, 1], [], []>} : vector<16x32xbf16>, vector<32x128xbf16>, vector<16x128xf32> -> vector<16x128xf32>
    %7 = vector.broadcast %0 : vector<1x128xf32> to vector<16x128xf32>
    %8 = arith.addf %6, %7 : vector<16x128xf32>
    %cst_8 = arith.constant 0.000000e+00 : f32
    %9 = vector.broadcast %cst_8 : f32 to vector<16x128xf32>
    %10 = arith.maximumf %8, %9 : vector<16x128xf32>
    %11 = arith.truncf %10 : vector<16x128xf32> to vector<16x128xbf16>
    %c0_9 = arith.constant 0 : index
    %c0_10 = arith.constant 0 : index
    %c0_11 = arith.constant 0 : index
    %12 = vector.load %arg3[%c0_9, %c0_10, %c0_11] : memref<3x128x128xbf16, #tpu.memory_space<vmem>>, vector<1x128x128xbf16>
    %13 = vector.shape_cast %12 : vector<1x128x128xbf16> to vector<128x128xbf16>
    %cst_12 = arith.constant dense<0.000000e+00> : vector<16x128xf32>
    %14 = tpu.matmul %11, %13, %cst_12 {dimension_numbers = #tpu.dot_dimension_numbers<[1], [0], [0], [1], [0, 0, 1, 1], [], []>} : vector<16x128xbf16>, vector<128x128xbf16>, vector<16x128xf32> -> vector<16x128xf32>
    %15 = vector.broadcast %1 : vector<1x128xf32> to vector<16x128xf32>
    %16 = arith.addf %14, %15 : vector<16x128xf32>
    %cst_13 = arith.constant 0.000000e+00 : f32
    %17 = vector.broadcast %cst_13 : f32 to vector<16x128xf32>
    %18 = arith.maximumf %16, %17 : vector<16x128xf32>
    %19 = arith.truncf %18 : vector<16x128xf32> to vector<16x128xbf16>
    %c1_14 = arith.constant 1 : index
    %c0_15 = arith.constant 0 : index
    %c0_16 = arith.constant 0 : index
    %20 = vector.load %arg3[%c1_14, %c0_15, %c0_16] : memref<3x128x128xbf16, #tpu.memory_space<vmem>>, vector<1x128x128xbf16>
    %21 = vector.shape_cast %20 : vector<1x128x128xbf16> to vector<128x128xbf16>
    %cst_17 = arith.constant dense<0.000000e+00> : vector<16x128xf32>
    %22 = tpu.matmul %19, %21, %cst_17 {dimension_numbers = #tpu.dot_dimension_numbers<[1], [0], [0], [1], [0, 0, 1, 1], [], []>} : vector<16x128xbf16>, vector<128x128xbf16>, vector<16x128xf32> -> vector<16x128xf32>
    %23 = vector.broadcast %2 : vector<1x128xf32> to vector<16x128xf32>
    %24 = arith.addf %22, %23 : vector<16x128xf32>
    %cst_18 = arith.constant 0.000000e+00 : f32
    %25 = vector.broadcast %cst_18 : f32 to vector<16x128xf32>
    %26 = arith.maximumf %24, %25 : vector<16x128xf32>
    %27 = arith.truncf %26 : vector<16x128xf32> to vector<16x128xbf16>
    %c2_19 = arith.constant 2 : index
    %c0_20 = arith.constant 0 : index
    %c0_21 = arith.constant 0 : index
    %28 = vector.load %arg3[%c2_19, %c0_20, %c0_21] : memref<3x128x128xbf16, #tpu.memory_space<vmem>>, vector<1x128x128xbf16>
    %29 = vector.shape_cast %28 : vector<1x128x128xbf16> to vector<128x128xbf16>
    %cst_22 = arith.constant dense<0.000000e+00> : vector<16x128xf32>
    %30 = tpu.matmul %27, %29, %cst_22 {dimension_numbers = #tpu.dot_dimension_numbers<[1], [0], [0], [1], [0, 0, 1, 1], [], []>} : vector<16x128xbf16>, vector<128x128xbf16>, vector<16x128xf32> -> vector<16x128xf32>
    %31 = vector.broadcast %3 : vector<1x128xf32> to vector<16x128xf32>
    %32 = arith.addf %30, %31 : vector<16x128xf32>
    %c0_23 = arith.constant 0 : index
    %c0_24 = arith.constant 0 : index
    %33 = vector.load %arg5[%c0_23, %c0_24] : memref<16x128xf32, #tpu.memory_space<vmem>>, vector<16x128xf32>
    tpu.vector_store %arg5[%c0_23, %c0_24], %32 {strides = array<i32>} : memref<16x128xf32, #tpu.memory_space<vmem>>, vector<16x128xf32>,
    return
  }
  func.func @transform_0(%arg0: i32) -> (i32, i32) {
    %c0_i32 = arith.constant 0 : i32
    %c0_i32_0 = arith.constant 0 : i32
    return %arg0, %c0_i32 : i32, i32
  }
  func.func @transform_1(%arg0: i32) -> (i32, i32) {
    %c0_i32 = arith.constant 0 : i32
    %c0_i32_0 = arith.constant 0 : i32
    %c0_i32_1 = arith.constant 0 : i32
    return %c0_i32, %c0_i32_0 : i32, i32
  }
  func.func @transform_2(%arg0: i32) -> (i32, i32, i32) {
    %c0_i32 = arith.constant 0 : i32
    %c0_i32_0 = arith.constant 0 : i32
    %c0_i32_1 = arith.constant 0 : i32
    %c0_i32_2 = arith.constant 0 : i32
    return %c0_i32, %c0_i32_0, %c0_i32_1 : i32, i32, i32
  }
  func.func @transform_3(%arg0: i32) -> (i32, i32) {
    %c0_i32 = arith.constant 0 : i32
    %c0_i32_0 = arith.constant 0 : i32
    %c0_i32_1 = arith.constant 0 : i32
    return %c0_i32, %c0_i32_0 : i32, i32
  }
  func.func @transform_4(%arg0: i32) -> (i32, i32) {
    %c0_i32 = arith.constant 0 : i32
    %c0_i32_0 = arith.constant 0 : i32
    return %arg0, %c0_i32 : i32, i32
  }
}

</mosaic_0001>

<llo_original>
// kernel: tpu_custom_call.1
$region0: #{tpu_custom_call.1}
  #allocation0 [shape = 'u32[]', space=smem, size = 0x4, offset = 0x4, fixed_abs, tag = 'smem constant byte address 0x4 - core index']
  #allocation1 [shape = 'u32[144,128]{1,0:T(1,128)}', space=vmem, size = 0x12000, scoped, tag = 'internal scratch']
  %s0 = inlined_call_operand.hbm [shape: bf16[16,32], index: 0, kind: input, shape index: {}]
  %s1 = inlined_call_operand.hbm [shape: bf16[32,128], index: 1, kind: input, shape index: {}]
  %s2 = inlined_call_operand.hbm [shape: bf16[3,128,128], index: 2, kind: input, shape index: {}]
  %s3 = inlined_call_operand.vmem [shape: f32[8,128], index: 3, kind: input, shape index: {}]
  %s4 = inlined_call_operand.hbm [shape: f32[16,128], index: 4, kind: output, shape index: {}]
  %s5 = sld [smem:[#allocation0]]
  $region38: #{tpu_custom_call.1} parent=0
    _
  %s7 = ssub.s32 1, %s5
  %s8 = scalar_select 0, %s7, %s5
  $region1: #{tpu_custom_call.1} parent=0
    #allocation2 [shape = 'u8[4096]{0}', space=vmem, size = 0x1000, scoped, tag = 'input window, operand 0, single buffered']
    #allocation3 [shape = 's32[1]{0}', space=sflag, size = 0x4, scoped, tag = 'scoped memory for tpu_custom_call.1']
    #allocation4 [shape = 's32[1]{0}', space=sflag, size = 0x4, scoped, tag = 'scoped memory for tpu_custom_call.1']
    #allocation5 [shape = 'u8[8192]{0}', space=vmem, size = 0x2000, scoped, tag = 'input window, operand 1, single buffered']
    #allocation6 [shape = 's32[1]{0}', space=sflag, size = 0x4, scoped, tag = 'scoped memory for tpu_custom_call.1']
    #allocation7 [shape = 'u8[98304]{0}', space=vmem, size = 0x18000, scoped, tag = 'input window, operand 2, single buffered']
    #allocation8 [shape = 'u8[8192]{0}', space=vmem, size = 0x2000, scoped, tag = 'output window, operand 0, single buffered']
    %9 = vsyncpa [#allocation3], 0
    %10 = vsyncpa [#allocation6], 0
    %11 = vsyncpa [#allocation4], 0
    // Predicated region
    $region2: #{tpu_custom_call.1} parent=1 // pred_check
      _
    $region3: #{tpu_custom_call.1} parent=1 // pred_check_branch
      %13 = sbr.rel (0) target = $region5
    $region4: #{tpu_custom_call.1} parent=1 // pred_region
      %s15 = ssub.s32 128, 128
      %16 = vsyncadd [#allocation3], %s15
      %s17 = sshll.u32 [#allocation2], 4
      %s18 = int_to_ptr.vmem [resolvable:$true] %s17
      %23 = dma.hbm_to_vmem [thread:$0]  %s0, 128, %s18, [#allocation3], 64, 64, 4
    $region5: #{tpu_custom_call.1} parent=1 // pred_fallthru
      _
    // Predicated region
    $region6: #{tpu_custom_call.1} parent=1 // pred_check
      _
    $region7: #{tpu_custom_call.1} parent=1 // pred_check_branch
      %25 = sbr.rel (0) target = $region9
    $region8: #{tpu_custom_call.1} parent=1 // pred_region
      %s27 = ssub.s32 256, 256
      %28 = vsyncadd [#allocation6], %s27
      %s29 = sshll.u32 [#allocation5], 4
      %s30 = int_to_ptr.vmem [resolvable:$true] %s29
      %35 = dma.hbm_to_vmem [thread:$0]  %s1, 256, %s30, [#allocation6], 64, 64, 4
    $region9: #{tpu_custom_call.1} parent=1 // pred_fallthru
      _
    // Predicated region
    $region10: #{tpu_custom_call.1} parent=1 // pred_check
      _
    $region11: #{tpu_custom_call.1} parent=1 // pred_check_branch
      %37 = sbr.rel (0) target = $region13
    $region12: #{tpu_custom_call.1} parent=1 // pred_region
      %s39 = ssub.s32 3072, 3072
      %40 = vsyncadd [#allocation6], %s39
      %s41 = sshll.u32 [#allocation7], 4
      %s42 = int_to_ptr.vmem [resolvable:$true] %s41
      %47 = dma.hbm_to_vmem [thread:$0]  %s2, 3072, %s42, [#allocation6], 64, 64, 4
    $region13: #{tpu_custom_call.1} parent=1 // pred_fallthru
      _
    // Predicated region
    $region14: #{tpu_custom_call.1} parent=1 // pred_check
      _
    $region15: #{tpu_custom_call.1} parent=1 // pred_check_branch
      %49 = sbr.rel (0) target = $region17
    $region16: #{tpu_custom_call.1} parent=1 // pred_region
      _
    $region17: #{tpu_custom_call.1} parent=1 // pred_fallthru
      _
    // Predicated region
    $region18: #{tpu_custom_call.1} parent=1 // pred_check
      _
    $region19: #{tpu_custom_call.1} parent=1 // pred_check_branch
      %51 = sbr.rel (0) target = $region21
    $region20: #{tpu_custom_call.1} parent=1 // pred_region
      %52 = dma.done [#allocation3], 128
    $region21: #{tpu_custom_call.1} parent=1 // pred_fallthru
      _
    // Predicated region
    $region22: #{tpu_custom_call.1} parent=1 // pred_check
      _
    $region23: #{tpu_custom_call.1} parent=1 // pred_check_branch
      %54 = sbr.rel (0) target = $region25
    $region24: #{tpu_custom_call.1} parent=1 // pred_region
      %55 = dma.done [#allocation6], 256
    $region25: #{tpu_custom_call.1} parent=1 // pred_fallthru
      _
    // Predicated region
    $region26: #{tpu_custom_call.1} parent=1 // pred_check
      _
    $region27: #{tpu_custom_call.1} parent=1 // pred_check_branch
      %57 = sbr.rel (0) target = $region29
    $region28: #{tpu_custom_call.1} parent=1 // pred_region
      %58 = dma.done [#allocation6], 3072
    $region29: #{tpu_custom_call.1} parent=1 // pred_fallthru
      _
    %v60 = vld [vmem:[%s3] sm:$0x1]
    %v61 = vld [vmem:[%s3 + $0x1] sm:$0x1]
    %v62 = vld [vmem:[%s3 + $0x2] sm:$0x1]
    %v63 = vld [vmem:[%s3 + $0x3] sm:$0x1]
    %v64 = vld [vmem:[#allocation2] sm:$0xf]
    %v65 = vld [vmem:[#allocation2 + $0x4] sm:$0xf]
    %v66 = vld [vmem:[#allocation5] sm:$0xf]
    %v67 = vld [vmem:[#allocation5 + $0x4] sm:$0xf]
    %v68 = vld [vmem:[#allocation5 + $0x8] sm:$0xf]
    %v69 = vld [vmem:[#allocation5 + $0xc] sm:$0xf]
    %v70 = vlaneseq
    %v71 = vshrl.u32 %v70, 7
    %v72 = vsub.s32 0, %v71
    %v73 = vrot.slane %v60, %v72
    %v76 = vunpack.c.l.b16 %v64
    %v77 = vunpack.c.l.b16 %v65
    %v78 = vpack.c.b16 %v77, %v76
    %v83 = vunpack.c.l.b16 %v66
    %v84 = vunpack.c.l.b16 %v67
    %v85 = vunpack.c.l.b16 %v68
    %v86 = vunpack.c.l.b16 %v69
    %v87 = vpack.c.b16 %v84, %v83
    %v88 = vpack.c.b16 %v86, %v85
    %vm91 = vcmask 261120
    %v93 = vsel %vm91, %v78, 0
    %95 = vmatprep.subr.bf16.mxu0 0
    %96 = vmatpush1.bf16.msra.mxu0 %v87
    %97 = vmatprep.subr.bf16.mxu0 0
    %98 = vmatpush1.bf16.msra.mxu0 %v88
    %99 = vmatprep.subr.bf16.mxu0 0
    %100 = vmatpush1.bf16.msra.mxu0 0
    %101 = vmatprep.subr.bf16.mxu0 0
    %102 = vmatpush1.bf16.msra.mxu0 0
    %103 = vmatprep.subr.bf16.mxu0 0
    %104 = vmatpush1.bf16.msra.mxu0 0
    %105 = vmatprep.subr.bf16.mxu0 0
    %106 = vmatpush1.bf16.msra.mxu0 0
    %107 = vmatprep.subr.bf16.mxu0 0
    %108 = vmatpush1.bf16.msra.mxu0 0
    %109 = vmatprep.subr.bf16.mxu0 0
    %110 = vmatpush1.bf16.msra.mxu0 0
    %111 = vmatprep.subr.bf16.mxu0 0
    %112 = vmatpush1.bf16.msra.mxu0 0
    %113 = vmatprep.subr.bf16.mxu0 0
    %114 = vmatpush1.bf16.msra.mxu0 0
    %115 = vmatprep.subr.bf16.mxu0 0
    %116 = vmatpush1.bf16.msra.mxu0 0
    %117 = vmatprep.subr.bf16.mxu0 0
    %118 = vmatpush1.bf16.msra.mxu0 0
    %119 = vmatprep.subr.bf16.mxu0 0
    %120 = vmatpush1.bf16.msra.mxu0 0
    %121 = vmatprep.subr.bf16.mxu0 0
    %122 = vmatpush1.bf16.msra.mxu0 0
    %123 = vmatprep.subr.bf16.mxu0 0
    %124 = vmatpush1.bf16.msra.mxu0 0
    %125 = vmatprep.subr.bf16.mxu0 0
    %126 = vmatpush1.bf16.msra.mxu0 0
    %127 = vmatprep.mubr.bf16.mxu0 0
    %128 = vmatmul.mubr.bf16.gmra.mrb[0].mxu0 %v93
    %v129 = vpop.f32.mrb[0].mxu0
    %v130 = vadd.f32 %v73, %v129
    %v131 = vpop.f32.mrb[0].mxu0
    %v132 = vpop.f32.mrb[0].mxu0
    %v133 = vadd.f32 %v73, %v132
    %v134 = vpop.f32.mrb[0].mxu0
    %135 = vdwg.mxu0
    %v136 = vmax.f32 %v130, 0.0
    %v137 = vmax.f32 %v133, 0.0
    %v138 = vpack.c.bf16 %v137, %v136
    %v139 = vld [vmem:[#allocation7] sm:$0xf]
    %v140 = vld [vmem:[#allocation7 + $0x4] sm:$0xf]
    %v141 = vld [vmem:[#allocation7 + $0x8] sm:$0xf]
    %v142 = vld [vmem:[#allocation7 + $0xc] sm:$0xf]
    %v143 = vld [vmem:[#allocation7 + $0x10] sm:$0xf]
    %v144 = vld [vmem:[#allocation7 + $0x14] sm:$0xf]
    %v145 = vld [vmem:[#allocation7 + $0x18] sm:$0xf]
    %v146 = vld [vmem:[#allocation7 + $0x1c] sm:$0xf]
    %v147 = vld [vmem:[#allocation7 + $0x20] sm:$0xf]
    %v148 = vld [vmem:[#allocation7 + $0x24] sm:$0xf]
    %v149 = vld [vmem:[#allocation7 + $0x28] sm:$0xf]
    %v150 = vld [vmem:[#allocation7 + $0x2c] sm:$0xf]
    %v151 = vld [vmem:[#allocation7 + $0x30] sm:$0xf]
    %v152 = vld [vmem:[#allocation7 + $0x34] sm:$0xf]
    %v153 = vld [vmem:[#allocation7 + $0x38] sm:$0xf]
    %v154 = vld [vmem:[#allocation7 + $0x3c] sm:$0xf]
    %v155 = vlaneseq
    %v156 = vshrl.u32 %v155, 7
    %v157 = vsub.s32 0, %v156
    %v158 = vrot.slane %v61, %v157
    %v175 = vunpack.c.l.b16 %v139
    %v176 = vunpack.c.l.b16 %v140
    %v177 = vunpack.c.l.b16 %v141
    %v178 = vunpack.c.l.b16 %v142
    %v179 = vunpack.c.l.b16 %v143
    %v180 = vunpack.c.l.b16 %v144
    %v181 = vunpack.c.l.b16 %v145
    %v182 = vunpack.c.l.b16 %v146
    %v183 = vunpack.c.l.b16 %v147
    %v184 = vunpack.c.l.b16 %v148
    %v185 = vunpack.c.l.b16 %v149
    %v186 = vunpack.c.l.b16 %v150
    %v187 = vunpack.c.l.b16 %v151
    %v188 = vunpack.c.l.b16 %v152
    %v189 = vunpack.c.l.b16 %v153
    %v190 = vunpack.c.l.b16 %v154
    %v191 = vpack.c.b16 %v176, %v175
    %v192 = vpack.c.b16 %v178, %v177
    %v193 = vpack.c.b16 %v180, %v179
    %v194 = vpack.c.b16 %v182, %v181
    %v195 = vpack.c.b16 %v184, %v183
    %v196 = vpack.c.b16 %v186, %v185
    %v197 = vpack.c.b16 %v188, %v187
    %v198 = vpack.c.b16 %v190, %v189
    %207 = vmatprep.subr.bf16.mxu0 0
    %208 = vmatpush1.bf16.msra.mxu0 %v191
    %209 = vmatprep.subr.bf16.mxu0 0
    %210 = vmatpush1.bf16.msra.mxu0 %v192
    %211 = vmatprep.subr.bf16.mxu0 0
    %212 = vmatpush1.bf16.msra.mxu0 %v193
    %213 = vmatprep.subr.bf16.mxu0 0
    %214 = vmatpush1.bf16.msra.mxu0 %v194
    %215 = vmatprep.subr.bf16.mxu0 0
    %216 = vmatpush1.bf16.msra.mxu0 %v195
    %217 = vmatprep.subr.bf16.mxu0 0
    %218 = vmatpush1.bf16.msra.mxu0 %v196
    %219 = vmatprep.subr.bf16.mxu0 0
    %220 = vmatpush1.bf16.msra.mxu0 %v197
    %221 = vmatprep.subr.bf16.mxu0 0
    %222 = vmatpush1.bf16.msra.mxu0 %v198
    %223 = vmatprep.subr.bf16.mxu0 0
    %224 = vmatpush1.bf16.msra.mxu0 0
    %225 = vmatprep.subr.bf16.mxu0 0
    %226 = vmatpush1.bf16.msra.mxu0 0
    %227 = vmatprep.subr.bf16.mxu0 0
    %228 = vmatpush1.bf16.msra.mxu0 0
    %229 = vmatprep.subr.bf16.mxu0 0
    %230 = vmatpush1.bf16.msra.mxu0 0
    %231 = vmatprep.subr.bf16.mxu0 0
    %232 = vmatpush1.bf16.msra.mxu0 0
    %233 = vmatprep.subr.bf16.mxu0 0
    %234 = vmatpush1.bf16.msra.mxu0 0
    %235 = vmatprep.subr.bf16.mxu0 0
    %236 = vmatpush1.bf16.msra.mxu0 0
    %237 = vmatprep.subr.bf16.mxu0 0
    %238 = vmatpush1.bf16.msra.mxu0 0
    %239 = vmatprep.mubr.bf16.mxu0 0
    %240 = vmatmul.mubr.bf16.gmra.mrb[0].mxu0 %v138
    %v241 = vpop.f32.mrb[0].mxu0
    %v242 = vadd.f32 %v158, %v241
    %v243 = vpop.f32.mrb[0].mxu0
    %v244 = vpop.f32.mrb[0].mxu0
    %v245 = vadd.f32 %v158, %v244
    %v246 = vpop.f32.mrb[0].mxu0
    %247 = vdwg.mxu0
    %v248 = vmax.f32 %v242, 0.0
    %v249 = vmax.f32 %v245, 0.0
    %v250 = vpack.c.bf16 %v249, %v248
    %s251 = scalar_lea.vmem [#allocation7], 64
    %v252 = vld [vmem:[%s251] sm:$0xf]
    %v253 = vld [vmem:[%s251 + $0x4] sm:$0xf]
    %v254 = vld [vmem:[%s251 + $0x8] sm:$0xf]
    %v255 = vld [vmem:[%s251 + $0xc] sm:$0xf]
    %v256 = vld [vmem:[%s251 + $0x10] sm:$0xf]
    %v257 = vld [vmem:[%s251 + $0x14] sm:$0xf]
    %v258 = vld [vmem:[%s251 + $0x18] sm:$0xf]
    %v259 = vld [vmem:[%s251 + $0x1c] sm:$0xf]
    %v260 = vld [vmem:[%s251 + $0x20] sm:$0xf]
    %v261 = vld [vmem:[%s251 + $0x24] sm:$0xf]
    %v262 = vld [vmem:[%s251 + $0x28] sm:$0xf]
    %v263 = vld [vmem:[%s251 + $0x2c] sm:$0xf]
    %v264 = vld [vmem:[%s251 + $0x30] sm:$0xf]
    %v265 = vld [vmem:[%s251 + $0x34] sm:$0xf]
    %v266 = vld [vmem:[%s251 + $0x38] sm:$0xf]
    %v267 = vld [vmem:[%s251 + $0x3c] sm:$0xf]
    %v268 = vlaneseq
    %v269 = vshrl.u32 %v268, 7
    %v270 = vsub.s32 0, %v269
    %v271 = vrot.slane %v62, %v270
    %v288 = vunpack.c.l.b16 %v252
    %v289 = vunpack.c.l.b16 %v253
    %v290 = vunpack.c.l.b16 %v254
    %v291 = vunpack.c.l.b16 %v255
    %v292 = vunpack.c.l.b16 %v256
    %v293 = vunpack.c.l.b16 %v257
    %v294 = vunpack.c.l.b16 %v258
    %v295 = vunpack.c.l.b16 %v259
    %v296 = vunpack.c.l.b16 %v260
    %v297 = vunpack.c.l.b16 %v261
    %v298 = vunpack.c.l.b16 %v262
    %v299 = vunpack.c.l.b16 %v263
    %v300 = vunpack.c.l.b16 %v264
    %v301 = vunpack.c.l.b16 %v265
    %v302 = vunpack.c.l.b16 %v266
    %v303 = vunpack.c.l.b16 %v267
    %v304 = vpack.c.b16 %v289, %v288
    %v305 = vpack.c.b16 %v291, %v290
    %v306 = vpack.c.b16 %v293, %v292
    %v307 = vpack.c.b16 %v295, %v294
    %v308 = vpack.c.b16 %v297, %v296
    %v309 = vpack.c.b16 %v299, %v298
    %v310 = vpack.c.b16 %v301, %v300
    %v311 = vpack.c.b16 %v303, %v302
    %320 = vmatprep.subr.bf16.mxu0 0
    %321 = vmatpush1.bf16.msra.mxu0 %v304
    %322 = vmatprep.subr.bf16.mxu0 0
    %323 = vmatpush1.bf16.msra.mxu0 %v305
    %324 = vmatprep.subr.bf16.mxu0 0
    %325 = vmatpush1.bf16.msra.mxu0 %v306
    %326 = vmatprep.subr.bf16.mxu0 0
    %327 = vmatpush1.bf16.msra.mxu0 %v307
    %328 = vmatprep.subr.bf16.mxu0 0
    %329 = vmatpush1.bf16.msra.mxu0 %v308
    %330 = vmatprep.subr.bf16.mxu0 0
    %331 = vmatpush1.bf16.msra.mxu0 %v309
    %332 = vmatprep.subr.bf16.mxu0 0
    %333 = vmatpush1.bf16.msra.mxu0 %v310
    %334 = vmatprep.subr.bf16.mxu0 0
    %335 = vmatpush1.bf16.msra.mxu0 %v311
    %336 = vmatprep.subr.bf16.mxu0 0
    %337 = vmatpush1.bf16.msra.mxu0 0
    %338 = vmatprep.subr.bf16.mxu0 0
    %339 = vmatpush1.bf16.msra.mxu0 0
    %340 = vmatprep.subr.bf16.mxu0 0
    %341 = vmatpush1.bf16.msra.mxu0 0
    %342 = vmatprep.subr.bf16.mxu0 0
    %343 = vmatpush1.bf16.msra.mxu0 0
    %344 = vmatprep.subr.bf16.mxu0 0
    %345 = vmatpush1.bf16.msra.mxu0 0
    %346 = vmatprep.subr.bf16.mxu0 0
    %347 = vmatpush1.bf16.msra.mxu0 0
    %348 = vmatprep.subr.bf16.mxu0 0
    %349 = vmatpush1.bf16.msra.mxu0 0
    %350 = vmatprep.subr.bf16.mxu0 0
    %351 = vmatpush1.bf16.msra.mxu0 0
    %352 = vmatprep.mubr.bf16.mxu0 0
    %353 = vmatmul.mubr.bf16.gmra.mrb[0].mxu0 %v250
    %v354 = vpop.f32.mrb[0].mxu0
    %v355 = vadd.f32 %v271, %v354
    %v356 = vpop.f32.mrb[0].mxu0
    %v357 = vpop.f32.mrb[0].mxu0
    %v358 = vadd.f32 %v271, %v357
    %v359 = vpop.f32.mrb[0].mxu0
    %360 = vdwg.mxu0
    %v361 = vmax.f32 %v355, 0.0
    %v362 = vmax.f32 %v358, 0.0
    %v363 = vpack.c.bf16 %v362, %v361
    %s364 = scalar_lea.vmem [#allocation7], 128
    %v365 = vld [vmem:[%s364] sm:$0xf]
    %v366 = vld [vmem:[%s364 + $0x4] sm:$0xf]
    %v367 = vld [vmem:[%s364 + $0x8] sm:$0xf]
    %v368 = vld [vmem:[%s364 + $0xc] sm:$0xf]
    %v369 = vld [vmem:[%s364 + $0x10] sm:$0xf]
    %v370 = vld [vmem:[%s364 + $0x14] sm:$0xf]
    %v371 = vld [vmem:[%s364 + $0x18] sm:$0xf]
    %v372 = vld [vmem:[%s364 + $0x1c] sm:$0xf]
    %v373 = vld [vmem:[%s364 + $0x20] sm:$0xf]
    %v374 = vld [vmem:[%s364 + $0x24] sm:$0xf]
    %v375 = vld [vmem:[%s364 + $0x28] sm:$0xf]
    %v376 = vld [vmem:[%s364 + $0x2c] sm:$0xf]
    %v377 = vld [vmem:[%s364 + $0x30] sm:$0xf]
    %v378 = vld [vmem:[%s364 + $0x34] sm:$0xf]
    %v379 = vld [vmem:[%s364 + $0x38] sm:$0xf]
    %v380 = vld [vmem:[%s364 + $0x3c] sm:$0xf]
    %v381 = vlaneseq
    %v382 = vshrl.u32 %v381, 7
    %v383 = vsub.s32 0, %v382
    %v384 = vrot.slane %v63, %v383
    %v401 = vunpack.c.l.b16 %v365
    %v402 = vunpack.c.l.b16 %v366
    %v403 = vunpack.c.l.b16 %v367
    %v404 = vunpack.c.l.b16 %v368
    %v405 = vunpack.c.l.b16 %v369
    %v406 = vunpack.c.l.b16 %v370
    %v407 = vunpack.c.l.b16 %v371
    %v408 = vunpack.c.l.b16 %v372
    %v409 = vunpack.c.l.b16 %v373
    %v410 = vunpack.c.l.b16 %v374
    %v411 = vunpack.c.l.b16 %v375
    %v412 = vunpack.c.l.b16 %v376
    %v413 = vunpack.c.l.b16 %v377
    %v414 = vunpack.c.l.b16 %v378
    %v415 = vunpack.c.l.b16 %v379
    %v416 = vunpack.c.l.b16 %v380
    %v417 = vpack.c.b16 %v402, %v401
    %v418 = vpack.c.b16 %v404, %v403
    %v419 = vpack.c.b16 %v406, %v405
    %v420 = vpack.c.b16 %v408, %v407
    %v421 = vpack.c.b16 %v410, %v409
    %v422 = vpack.c.b16 %v412, %v411
    %v423 = vpack.c.b16 %v414, %v413
    %v424 = vpack.c.b16 %v416, %v415
    %433 = vmatprep.subr.bf16.mxu0 0
    %434 = vmatpush1.bf16.msra.mxu0 %v417
    %435 = vmatprep.subr.bf16.mxu0 0
    %436 = vmatpush1.bf16.msra.mxu0 %v418
    %437 = vmatprep.subr.bf16.mxu0 0
    %438 = vmatpush1.bf16.msra.mxu0 %v419
    %439 = vmatprep.subr.bf16.mxu0 0
    %440 = vmatpush1.bf16.msra.mxu0 %v420
    %441 = vmatprep.subr.bf16.mxu0 0
    %442 = vmatpush1.bf16.msra.mxu0 %v421
    %443 = vmatprep.subr.bf16.mxu0 0
    %444 = vmatpush1.bf16.msra.mxu0 %v422
    %445 = vmatprep.subr.bf16.mxu0 0
    %446 = vmatpush1.bf16.msra.mxu0 %v423
    %447 = vmatprep.subr.bf16.mxu0 0
    %448 = vmatpush1.bf16.msra.mxu0 %v424
    %449 = vmatprep.subr.bf16.mxu0 0
    %450 = vmatpush1.bf16.msra.mxu0 0
    %451 = vmatprep.subr.bf16.mxu0 0
    %452 = vmatpush1.bf16.msra.mxu0 0
    %453 = vmatprep.subr.bf16.mxu0 0
    %454 = vmatpush1.bf16.msra.mxu0 0
    %455 = vmatprep.subr.bf16.mxu0 0
    %456 = vmatpush1.bf16.msra.mxu0 0
    %457 = vmatprep.subr.bf16.mxu0 0
    %458 = vmatpush1.bf16.msra.mxu0 0
    %459 = vmatprep.subr.bf16.mxu0 0
    %460 = vmatpush1.bf16.msra.mxu0 0
    %461 = vmatprep.subr.bf16.mxu0 0
    %462 = vmatpush1.bf16.msra.mxu0 0
    %463 = vmatprep.subr.bf16.mxu0 0
    %464 = vmatpush1.bf16.msra.mxu0 0
    %465 = vmatprep.mubr.bf16.mxu0 0
    %466 = vmatmul.mubr.bf16.gmra.mrb[0].mxu0 %v363
    %v467 = vpop.f32.mrb[0].mxu0
    %v468 = vadd.f32 %v384, %v467
    %v469 = vpop.f32.mrb[0].mxu0
    %v470 = vpop.f32.mrb[0].mxu0
    %v471 = vadd.f32 %v384, %v470
    %v472 = vpop.f32.mrb[0].mxu0
    %473 = vdwg.mxu0
    %474 = vst [vmem:[#allocation8] sm:$0xff] %v468
    %475 = vst [vmem:[#allocation8 + $0x8] sm:$0xff] %v471
    // Predicated region
    $region30: #{tpu_custom_call.1} parent=1 // pred_check
      _
    $region31: #{tpu_custom_call.1} parent=1 // pred_check_branch
      %477 = sbr.rel (0) target = $region33
    $region32: #{tpu_custom_call.1} parent=1 // pred_region
      %s479 = ssub.s32 256, 256
      %480 = vsyncadd [#allocation4], %s479
      %s481 = sshll.u32 [#allocation8], 4
      %s482 = int_to_ptr.vmem [resolvable:$true] %s481
      %487 = dma.vmem_to_hbm [thread:$0]  %s482, 256, %s4, [#allocation4], 128, 128, 8
    $region33: #{tpu_custom_call.1} parent=1 // pred_fallthru
      _
    // Predicated region
    $region34: #{tpu_custom_call.1} parent=1 // pred_check
      _
    $region35: #{tpu_custom_call.1} parent=1 // pred_check_branch
      %489 = sbr.rel (0) target = $region37
    $region36: #{tpu_custom_call.1} parent=1 // pred_region
      %490 = dma.done [#allocation4], 256
    $region37: #{tpu_custom_call.1} parent=1 // pred_fallthru
      _
    %491 = vsyncpa [#allocation3], 1
    %492 = vsyncpa [#allocation6], 1
    %493 = vsyncpa [#allocation4], 1

</llo_original>
